<compile_context>
chip_gen: v5e
topology: v5e:2x2
jax: 0.10.0
libtpu: 0.0.40
codegen_flags: <defaults>
</compile_context>

<pallas_src>
import math
import functools
import numpy as np
import jax
import jax.numpy as jnp
from jax import lax
from jax.experimental import pallas as pl
from jax.experimental.pallas import tpu as pltpu


# ---------------------------------------------------------------------------
# Parameter setup (plain JAX glue, input-independent)
# ---------------------------------------------------------------------------
def ir_effective_weight(w):
    """IRConv2d weight transform: per-filter center/normalize, sign, pow2 scale.

    w: (Cout, Cin_per_group, kh, kw) -> effective weight, same shape.
    Resulting values are +-2^k (or 0), exactly representable in bf16.
    """
    cout = w.shape[0]
    wf = w.reshape(cout, -1)
    bw = wf - jnp.mean(wf, axis=-1, keepdims=True)
    bw = bw / jnp.std(bw, axis=-1, ddof=1, keepdims=True)          # unbiased std (torch default)
    sw = jnp.exp2(jnp.round(jnp.log(jnp.mean(jnp.abs(bw), axis=-1)) / math.log(2.0)))
    eff = jnp.sign(bw) * sw[:, None]
    return eff.reshape(w.shape)


def bn_fold(gamma, beta, mean, var, eps=1e-5):
    scale = gamma / jnp.sqrt(var + eps)
    shift = beta - mean * scale
    return scale.astype(jnp.float32), shift.astype(jnp.float32)


def grouped3x3_to_group_mats(eff3, n_groups):
    """(C4, ipg, 3, 3) grouped-conv weight -> (n_groups, opg, 9*ipg) tap matrices.

    W[g, o, t*ipg + i] = eff3[g*opg + o, i, t//3, t%3], matching the in-kernel
    per-group tap stacking order.
    """
    C4, ipg = eff3.shape[0], eff3.shape[1]
    opg = C4 // n_groups
    mats = []
    for g in range(n_groups):
        blk = eff3[g * opg:(g + 1) * opg]                  # (opg, ipg, 3, 3)
        mats.append(jnp.transpose(blk, (0, 2, 3, 1)).reshape(opg, 9 * ipg))
    return jnp.stack(mats, axis=0).astype(jnp.bfloat16)


def make_tap_mask(B, H, W):
    """(9, B*H*W) f32 validity mask for the nine 3x3 taps (SAME padding).

    Depends only on the lane index -> computed once host-side instead of
    per-channel inside the kernel.
    """
    N = B * H * W
    n = np.arange(N)
    yy = (n // W) % H
    xx = n % W
    m = np.zeros((9, N), np.float32)
    for t in range(9):
        dy, dx = t // 3 - 1, t % 3 - 1
        m[t] = ((yy + dy >= 0) & (yy + dy < H) & (xx + dx >= 0) & (xx + dx < W))
    return jnp.asarray(m)


# ---------------------------------------------------------------------------
# pltpu.roll direction probe (cached per backend) -- makes the 3x3-tap shift
# generation robust to the rotate sign convention of the backend.
# ---------------------------------------------------------------------------
_ROLL_PROBE_CACHE = {}


def _roll_probe_kernel(x_ref, o_ref):
    o_ref[...] = pltpu.roll(x_ref[...], 1, 1)


def _roll_matches_numpy():
    """True iff pltpu.roll(x, s, ax) behaves like np.roll(x, s, ax)."""
    key = jax.default_backend()
    if key not in _ROLL_PROBE_CACHE:
        probe = jnp.broadcast_to(jnp.arange(128, dtype=jnp.float32), (8, 128))
        out = pl.pallas_call(
            _roll_probe_kernel,
            out_shape=jax.ShapeDtypeStruct((8, 128), jnp.float32),
        )(probe)
        # np.roll(iota, 1) = [127, 0, 1, ...]  ->  out[0, 1] == 0
        _ROLL_PROBE_CACHE[key] = bool(np.asarray(out)[0, 1] == 0.0)
    return _ROLL_PROBE_CACHE[key]


# ---------------------------------------------------------------------------
# Pallas kernel: whole FeedForward forward pass, single invocation.
# Activations are (C, N) with N = B*H*W on the 128-wide lane axis.
# ---------------------------------------------------------------------------
def ff_kernel(x_ref, w1_ref, w2_ref, w3_ref, w4_ref, w5_ref, mask_ref, sb_ref,
              out_ref, *, H, W, roll_matches_numpy):
    N = x_ref.shape[1]
    C = w5_ref.shape[0]
    C2 = w1_ref.shape[0]
    C4 = w2_ref.shape[0]
    n_groups = w3_ref.shape[0]
    ipg = w3_ref.shape[2] // 9

    def gelu(v):
        return 0.5 * v * (1.0 + lax.erf(v * 0.7071067811865476))

    def bsign(v):                       # sign() -> exact bf16 MXU operand (+-1 / 0)
        return jnp.sign(v).astype(jnp.bfloat16)

    # Packed per-channel BN scale/shift columns (rows padded to C4 host-side).
    sb = sb_ref[...]                                                # (C4, 10) f32
    s1, b1 = sb[0:C2, 0:1], sb[0:C2, 1:2]
    s2, b2 = sb[0:C4, 2:3], sb[0:C4, 3:4]
    s3, b3 = sb[0:C4, 4:5], sb[0:C4, 5:6]
    s4, b4 = sb[0:C2, 6:7], sb[0:C2, 7:8]
    s5, b5 = sb[0:C, 8:9], sb[0:C, 9:10]

    x = x_ref[...]                                                  # (C, N) f32

    # BinaryConv2d_Fusion_Increase #1: W1 @ sign(x), BN
    # (hardtanh dropped: its only consumer is the next layer's sign())
    h = jnp.dot(w1_ref[...], bsign(x), preferred_element_type=jnp.float32)
    h = h * s1 + b1

    # BinaryConv2d_Fusion_Increase #2: W2 @ sign(h), BN, hardtanh, GELU
    # (kept exactly: its value feeds the FF_BICONV3 residual path)
    h = jnp.dot(w2_ref[...], bsign(h), preferred_element_type=jnp.float32)
    h = jnp.clip(h * s2 + b2, -1.0, 1.0)
    h = gelu(h)

    # FF_BICONV3: grouped 3x3 binary conv as per-group im2col matmuls.
    residual = h
    a = jnp.sign(h)                                                 # (C4, N) f32, {-1,0,+1}

    # Static lane shift per tap: rolled[n] = a[n + dy*W + dx] (wraps masked).
    shifts = []
    for t in range(9):
        dy, dx = t // 3 - 1, t % 3 - 1
        off = dy * W + dx
        shifts.append((-off if roll_matches_numpy else off) % N)
    # Precomputed (1, N) edge-validity masks, broadcast over channels.
    m = mask_ref[...]
    mask_rows = [m[t:t + 1, :] for t in range(9)]

    group_outs = []
    for g in range(n_groups):                                       # static unroll
        ag = a[g * ipg:(g + 1) * ipg, :]                            # (ipg, N)
        cols = []
        for t in range(9):                                          # static unroll
            rolled = ag if shifts[t] == 0 else pltpu.roll(ag, shifts[t], 1)
            cols.append(rolled if t == 4 else rolled * mask_rows[t])
        # TODO(synk): at scale, write taps into a VMEM scratch (scratch_shapes)
        # or accumulate per-tap matmuls instead of materializing this concat.
        stacked = jnp.concatenate(cols, axis=0).astype(jnp.bfloat16)  # (9*ipg, N)
        group_outs.append(jnp.dot(w3_ref[g], stacked,
                                  preferred_element_type=jnp.float32))  # (opg, N)
    h = jnp.concatenate(group_outs, axis=0)                         # (C4, N)
    # BN + residual.  The module's hardtanh + GELU here are dropped: their only
    # consumer is bsign(h) below and sign(gelu(clip(z,-1,1))) == sign(z)
    # (divergence only if gelu underflows a denormal to +-0 -- negligible).
    h = h * s3 + b3 + residual

    # BinaryConv2d_Fusion_Decrease #1 (hardtanh dropped: only feeds next sign())
    h = jnp.dot(w4_ref[...], bsign(h), preferred_element_type=jnp.float32)
    h = h * s4 + b4

    # BinaryConv2d_Fusion_Decrease #2 (final hardtanh is the module output: keep)
    h = jnp.dot(w5_ref[...], bsign(h), preferred_element_type=jnp.float32)
    h = jnp.clip(h * s5 + b5, -1.0, 1.0)

    out_ref[...] = h                                                # lane-dense store


def feedforward_pallas(x, params):
    """x: (B, H, W, C) float32, NHWC (matches the PyTorch module's input)."""
    (w1, w2, w3g, w4, w5, s1, b1, s2, b2, s3, b3, s4, b4, s5, b5) = params
    B, H, W, C = x.shape
    N = B * H * W
    C4 = w2.shape[0]

    # Lane-dense layout: channels on sublanes, B*H*W on the 128-wide lane axis.
    # TODO(synk): once C >= 128, switch to an (N, C) layout (free reshape of
    # NHWC) to drop these wrapper-side HBM transposes (most important on v5e).
    xt = jnp.transpose(x, (3, 0, 1, 2)).reshape(C, N)

    # All ten per-channel BN scale/shift columns packed into one (C4, 10) input.
    pad = lambda v: jnp.pad(v.astype(jnp.float32), (0, C4 - v.shape[0]))
    sb = jnp.stack([pad(s1), pad(b1), pad(s2), pad(b2), pad(s3), pad(b3),
                    pad(s4), pad(b4), pad(s5), pad(b5)], axis=1)

    mask = make_tap_mask(B, H, W)

    kernel = functools.partial(ff_kernel, H=H, W=W,
                               roll_matches_numpy=_roll_matches_numpy())
    out_t = pl.pallas_call(
        kernel,
        out_shape=jax.ShapeDtypeStruct((C, N), jnp.float32),
    )(xt, w1, w2, w3g, w4, w5, mask, sb)

    return jnp.transpose(out_t.reshape(C, B, H, W), (1, 2, 3, 0))


# ---------------------------------------------------------------------------
# Pure-JAX reference (full module semantics, for the correctness check)
# ---------------------------------------------------------------------------
def feedforward_ref(x, dim, W1, W2, k3_hwio, W4, W5,
                    s1, b1, s2, b2, s3, b3, s4, b4, s5, b5):
    def gelu(v):
        return 0.5 * v * (1.0 + lax.erf(v * 0.7071067811865476))

    h = jnp.clip((jnp.sign(x) @ W1) * s1 + b1, -1.0, 1.0)
    h = jnp.clip((jnp.sign(h) @ W2) * s2 + b2, -1.0, 1.0)
    h = gelu(h)
    res = h
    a = jnp.sign(h)
    conv = lax.conv_general_dilated(
        a, k3_hwio, window_strides=(1, 1), padding="SAME",
        dimension_numbers=("NHWC", "HWIO", "NHWC"), feature_group_count=dim)
    h = jnp.clip(conv * s3 + b3 + res, -1.0, 1.0)
    h = gelu(h)
    h = jnp.clip((jnp.sign(h) @ W4) * s4 + b4, -1.0, 1.0)
    h = jnp.clip((jnp.sign(h) @ W5) * s5 + b5, -1.0, 1.0)
    return h


# ---------------------------------------------------------------------------
if __name__ == "__main__":
    dim, mult = 4, 2
    B, H, W = 2, 8, 8                       # B*H*W = 128 -> exactly one lane row
    C, C2, C4 = dim, dim * mult, dim * mult * mult

    key = jax.random.PRNGKey(0)
    ks = jax.random.split(key, 16)

    x = jax.random.normal(ks[0], (B, H, W, C), jnp.float32)

    # Raw conv weights in PyTorch OIHW layout (shapes from the module __init__)
    w1_raw = 0.5 * jax.random.normal(ks[1], (C2, C, 1, 1), jnp.float32)
    w2_raw = 0.5 * jax.random.normal(ks[2], (C4, C2, 1, 1), jnp.float32)
    w3_raw = 0.5 * jax.random.normal(ks[3], (C4, C4 // dim, 3, 3), jnp.float32)  # groups=dim
    w4_raw = 0.5 * jax.random.normal(ks[4], (C2, C4, 1, 1), jnp.float32)
    w5_raw = 0.5 * jax.random.normal(ks[5], (C, C2, 1, 1), jnp.float32)

    eff1, eff2, eff3, eff4, eff5 = map(ir_effective_weight,
                                       (w1_raw, w2_raw, w3_raw, w4_raw, w5_raw))

    # 1x1 convs -> (Cout, Cin) matrices for the transposed layout; bf16 exact (+-pow2)
    WT1 = eff1[:, :, 0, 0].astype(jnp.bfloat16)
    WT2 = eff2[:, :, 0, 0].astype(jnp.bfloat16)
    WT4 = eff4[:, :, 0, 0].astype(jnp.bfloat16)
    WT5 = eff5[:, :, 0, 0].astype(jnp.bfloat16)
    # grouped 3x3 conv -> (dim, opg, 9*ipg) per-group im2col tap matrices
    W3G = grouped3x3_to_group_mats(eff3, dim)
    k3_hwio = jnp.transpose(eff3, (2, 3, 1, 0))          # (3, 3, ipg, C4) for the reference

    # BatchNorm2d params (inference mode), deterministic
    def bn_init(k, n):
        k1, k2, k3, k4 = jax.random.split(k, 4)
        gamma = 1.0 + 0.1 * jax.random.normal(k1, (n,), jnp.float32)
        beta = 0.1 * jax.random.normal(k2, (n,), jnp.float32)
        mean = 0.1 * jax.random.normal(k3, (n,), jnp.float32)
        var = jnp.abs(jax.random.normal(k4, (n,), jnp.float32)) + 0.5
        return gamma, beta, mean, var

    s1, b1 = bn_fold(*bn_init(ks[6], C2))
    s2, b2 = bn_fold(*bn_init(ks[7], C4))
    s3, b3 = bn_fold(*bn_init(ks[8], C4))
    s4, b4 = bn_fold(*bn_init(ks[9], C2))
    s5, b5 = bn_fold(*bn_init(ks[10], C))

    params = (WT1, WT2, W3G, WT4, WT5, s1, b1, s2, b2, s3, b3, s4, b4, s5, b5)

    out = jax.block_until_ready(feedforward_pallas(x, params))

    ref = feedforward_ref(x, dim,
                          eff1[:, :, 0, 0].T, eff2[:, :, 0, 0].T, k3_hwio,
                          eff4[:, :, 0, 0].T, eff5[:, :, 0, 0].T,
                          s1, b1, s2, b2, s3, b3, s4, b4, s5, b5)
    ref = jax.block_until_ready(ref)

    np.testing.assert_allclose(np.asarray(out), np.asarray(ref), rtol=1e-3, atol=1e-3)
    print("KERNEL_OK")
</pallas_src>

<mosaic_0001>
module attributes {stable_mosaic.version = 11 : i64} {
  func.func @_roll_probe_kernel(%arg0: memref<8x128xf32, #tpu.memory_space<vmem>>, %arg1: memref<8x128xf32, #tpu.memory_space<vmem>>) attributes {dimension_semantics = [], scalar_prefetch = 0 : i64, scratch_operands = 0 : i64, tpu.core_type = #tpu.core_type<tc>} {
    %c0 = arith.constant 0 : index
    %c0_0 = arith.constant 0 : index
    %0 = vector.load %arg0[%c0, %c0_0] : memref<8x128xf32, #tpu.memory_space<vmem>>, vector<8x128xf32>
    %c1_i32 = arith.constant 1 : i32
    %1 = tpu.dynamic_rotate %0 by %c1_i32 dim 1 : vector<8x128xf32>, i32 -> vector<8x128xf32>
    %c0_1 = arith.constant 0 : index
    %c0_2 = arith.constant 0 : index
    %2 = vector.load %arg1[%c0_1, %c0_2] : memref<8x128xf32, #tpu.memory_space<vmem>>, vector<8x128xf32>
    tpu.vector_store %arg1[%c0_1, %c0_2], %1 {strides = array<i32>} : memref<8x128xf32, #tpu.memory_space<vmem>>, vector<8x128xf32>,
    return
  }
}

</mosaic_0001>

<llo_original>
// kernel: tpu_custom_call.1
$region0: #{tpu_custom_call.1}
  #allocation0 [shape = 'u32[]', space=smem, size = 0x4, offset = 0x4, fixed_abs, tag = 'smem constant byte address 0x4 - core index']
  #allocation1 [shape = 'u32[72,128]{1,0:T(1,128)}', space=vmem, size = 0x9000, scoped, tag = 'internal scratch']
  %s0 = inlined_call_operand.hbm [shape: f32[8,128], index: 0, kind: input, shape index: {}]
  %s1 = inlined_call_operand.hbm [shape: f32[8,128], index: 1, kind: output, shape index: {}]
  %s2 = sld [smem:[#allocation0]]
  $region18: #{tpu_custom_call.1} parent=0
    _
  %s4 = ssub.s32 1, %s2
  %s5 = scalar_select 0, %s4, %s2
  $region1: #{tpu_custom_call.1} parent=0
    #allocation2 [shape = 'u8[4096]{0}', space=vmem, size = 0x1000, scoped, tag = 'input window, operand 0, single buffered']
    #allocation3 [shape = 's32[1]{0}', space=sflag, size = 0x4, scoped, tag = 'scoped memory for tpu_custom_call.1']
    #allocation4 [shape = 's32[1]{0}', space=sflag, size = 0x4, scoped, tag = 'scoped memory for tpu_custom_call.1']
    #allocation5 [shape = 'u8[4096]{0}', space=vmem, size = 0x1000, scoped, tag = 'output window, operand 0, single buffered']
    %6 = vsyncpa [#allocation3], 0
    %7 = vsyncpa [#allocation4], 0
    // Predicated region
    $region2: #{tpu_custom_call.1} parent=1 // pred_check
      _
    $region3: #{tpu_custom_call.1} parent=1 // pred_check_branch
      %9 = sbr.rel (0) target = $region5
    $region4: #{tpu_custom_call.1} parent=1 // pred_region
      %11 = vsyncadd [#allocation3], 0
      %s13 = sshll.u32 %s0, 4
      %s14 = int_to_ptr.hbm [resolvable:$true] %s13
      %s15 = sshll.u32 [#allocation2], 4
      %s16 = int_to_ptr.vmem [resolvable:$true] %s15
      %18 = dma.hbm_to_vmem [thread:$0]  %s14, 128, %s16, [#allocation3]
    $region5: #{tpu_custom_call.1} parent=1 // pred_fallthru
      _
    // Predicated region
    $region6: #{tpu_custom_call.1} parent=1 // pred_check
      _
    $region7: #{tpu_custom_call.1} parent=1 // pred_check_branch
      %20 = sbr.rel (0) target = $region9
    $region8: #{tpu_custom_call.1} parent=1 // pred_region
      %22 = dma.done [#allocation3], 128
    $region9: #{tpu_custom_call.1} parent=1 // pred_fallthru
      _
    %v23 = vld [vmem:[#allocation2] sm:$0xff]
    %24 = vrot.lane.b32.xlu0 %v23, 1
    %v25 = vpop.permute.xlu0 %24
    %26 = vst [vmem:[#allocation5] sm:$0xff] %v25
    // Predicated region
    $region10: #{tpu_custom_call.1} parent=1 // pred_check
      _
    $region11: #{tpu_custom_call.1} parent=1 // pred_check_branch
      %28 = sbr.rel (0) target = $region13
    $region12: #{tpu_custom_call.1} parent=1 // pred_region
      %30 = vsyncadd [#allocation4], 0
      %s32 = sshll.u32 [#allocation5], 4
      %s33 = int_to_ptr.vmem [resolvable:$true] %s32
      %s34 = sshll.u32 %s1, 4
      %s35 = int_to_ptr.hbm [resolvable:$true] %s34
      %37 = dma.vmem_to_hbm [thread:$0]  %s33, 128, %s35, [#allocation4]
    $region13: #{tpu_custom_call.1} parent=1 // pred_fallthru
      _
    // Predicated region
    $region14: #{tpu_custom_call.1} parent=1 // pred_check
      _
    $region15: #{tpu_custom_call.1} parent=1 // pred_check_branch
      %39 = sbr.rel (0) target = $region17
    $region16: #{tpu_custom_call.1} parent=1 // pred_region
      %41 = dma.done [#allocation4], 128
    $region17: #{tpu_custom_call.1} parent=1 // pred_fallthru
      _
    %42 = vsyncpa [#allocation3], 1
    %43 = vsyncpa [#allocation4], 1

</llo_original>
